<compile_context>
chip_gen: v7x
topology: tpu7x:2x2x1
jax: 0.10.0
libtpu: 0.0.40
codegen_flags: <defaults>
</compile_context>

<pallas_src>
import math
import functools

import jax
import jax.numpy as jnp
from jax import lax
from jax.experimental import pallas as pl
from jax.experimental.pallas import tpu as pltpu


_INV_SQRT2 = 0.7071067811865476
_SQRT_2_OVER_PI = 0.7978845608028654


def _round_up(a, m):
    return (a + m - 1) // m * m


def _round_down(a, m):
    return a // m * m


def _device_kind():
    try:
        return jax.devices()[0].device_kind.lower()
    except Exception:
        return ""


def _gelu(x, approximate):
    if approximate:
        # tanh form: transcendental runs on the EUP (free slot vs. the long
        # VALU erf polynomial).  Slightly deviates from F.gelu's default.
        c = jnp.asarray(_SQRT_2_OVER_PI, dtype=x.dtype)
        k = jnp.asarray(0.044715, dtype=x.dtype)
        return 0.5 * x * (1.0 + jnp.tanh(c * (x + k * x * x * x)))
    # Exact erf form == F.gelu(approximate='none').
    return 0.5 * x * (1.0 + lax.erf(x * jnp.asarray(_INV_SQRT2, dtype=x.dtype)))


def critic_kernel(x_ref, w1_ref, b1_ref, w2_ref, b2_ref, w3_ref, b3_ref, v_ref,
                  *, approximate_gelu, first_gelu_low_precision, fc3_on_mxu):
    # x_ref : (TB, Din)  x.dtype (f32)   raw batch rows, contiguous DMA
    # w1_ref: (H, Din)   compute dtype   PyTorch (out, in) layout
    # b1_ref: (H, 1)     f32
    # w2_ref: (H, H)     compute dtype
    # b2_ref: (H, 1)     f32
    # w3_ref: (H, 1)     f32             fc3 weight as a column
    # b3_ref: (1, 1)     f32             SMEM scalar
    # v_ref : (1, TB)    f32             lane-dense output

    cd = w1_ref.dtype
    x = x_ref[...].astype(cd)            # in-kernel cast; no host pre-pass over x

    # fc1: (H, Din) . (TB, Din)^T -> (H, TB); batch moves onto the lane axis.
    h = lax.dot_general(w1_ref[...], x,
                        dimension_numbers=(((1,), (1,)), ((), ())),
                        preferred_element_type=jnp.float32)
    if first_gelu_low_precision:
        # bf16 bias + GELU (v6e/v7x native bf16 VPU/EUP); feeds fc2 directly.
        h = _gelu(h.astype(cd) + b1_ref[...].astype(cd), approximate_gelu)
    else:
        h = _gelu(h + b1_ref[...], approximate_gelu).astype(w2_ref.dtype)

    # fc2: (H, H) @ (H, TB) -> (H, TB), f32 accumulation on the MXU.
    h = jnp.dot(w2_ref[...], h, preferred_element_type=jnp.float32)
    h = _gelu(h + b2_ref[...], approximate_gelu)

    # fc3 (out_dim = 1).
    if fc3_on_mxu:
        # Large H: (1, H) @ (H, TB) on the otherwise mostly-idle MXU.
        v = lax.dot_general(w3_ref[...], h,
                            dimension_numbers=(((0,), (0,)), ((), ())),
                            preferred_element_type=jnp.float32)
    else:
        # Small H: VPU multiply + sublane reduce; keeps (1, TB) lane-dense.
        v = jnp.sum(h * w3_ref[...], axis=0, keepdims=True)
    v_ref[...] = (v + b3_ref[0, 0]).astype(v_ref.dtype)


def critic_net_forward(x, params, *, tile_b=4096, compute_dtype=jnp.bfloat16,
                       approximate_gelu=False):
    """x: (B, input_shape) float32.  params in PyTorch nn.Linear layout.

    Returns v: (B, 1) float32.
    """
    w1, b1, w2, b2, w3, b3 = params              # w: (out, in), b: (out,)
    B, Din = x.shape
    H = w1.shape[0]

    kind = _device_kind()
    is_v5 = "v5" in kind
    is_v7 = "v7" in kind

    # --- generation-aware VMEM budgeting -------------------------------------
    # v7x has 64 MiB physical VMEM (vs 128 MiB on v5e/v6e): budget/cap lower.
    if is_v7:
        vmem_budget, vmem_limit = 24 << 20, 48 << 20
    else:
        vmem_budget, vmem_limit = 32 << 20, 64 << 20

    w_item = jnp.dtype(compute_dtype).itemsize
    x_item = jnp.dtype(x.dtype).itemsize
    # Grid-invariant operands (counted double-buffered for safety).
    weight_bytes = 2 * (H * Din * w_item + H * H * w_item + 3 * H * 4) + 4096
    # Per batch element: x tile (dbl-buffered) + out tile (dbl-buffered) +
    # ~4 live f32 (H,) hidden columns (h, GELU temps, fc2 result).
    per_b = 2 * Din * x_item + 2 * 4 + 4 * H * 4
    tb_cap = max(128, (vmem_budget - weight_bytes) // per_b)
    tb = int(min(tile_b, tb_cap, 8192))

    # --- batch tiling ---------------------------------------------------------
    # v7x: keep both TensorCores busy -- force >= 2 grid steps once B >= 256.
    if is_v7 and B >= 256:
        tb = min(tb, max(128, _round_down(B // 2, 128)))

    if B <= tb:
        tb, B_pad = B, B                          # single block, no padding
    else:
        tb = max(128, _round_down(tb, 128))       # lane-dense output blocks
        B_pad = _round_up(B, tb)

    xp = x if B_pad == B else jnp.pad(x, ((0, B_pad - B), (0, 0)))

    # Layout plumbing on the (tiny) parameters only; x streams untouched.
    w1c = w1.astype(compute_dtype)                # (H, Din)
    w2c = w2.astype(compute_dtype)                # (H, H)
    b1c = b1.reshape(H, 1).astype(jnp.float32)
    b2c = b2.reshape(H, 1).astype(jnp.float32)
    w3c = w3.reshape(H, 1).astype(jnp.float32)    # (1, H) -> (H, 1)
    b3c = b3.reshape(1, 1).astype(jnp.float32)

    first_gelu_low_precision = bool(approximate_gelu) and (not is_v5) \
        and jnp.dtype(compute_dtype).itemsize == 2
    fc3_on_mxu = H >= 256

    kernel = functools.partial(
        critic_kernel,
        approximate_gelu=bool(approximate_gelu),
        first_gelu_low_precision=first_gelu_low_precision,
        fc3_on_mxu=fc3_on_mxu,
    )

    needed = weight_bytes + per_b * tb + (2 << 20)
    compiler_kwargs = dict(dimension_semantics=("parallel",))
    if needed > (12 << 20):                       # only raise past the smallest
        compiler_kwargs["vmem_limit_bytes"] = int(vmem_limit)  # default scoped limit

    grid = (B_pad // tb,)
    # NOTE: weight/bias BlockSpecs use constant index_maps, so Pallas skips
    # their re-DMA across grid steps; explicitly single-buffering them only
    # matters once H >= ~512 (or on v7x's smaller VMEM).
    vt = pl.pallas_call(
        kernel,
        out_shape=jax.ShapeDtypeStruct((1, B_pad), jnp.float32),
        grid=grid,
        in_specs=[
            pl.BlockSpec((tb, Din), lambda i: (i, 0)),          # x rows (streamed)
            pl.BlockSpec((H, Din), lambda i: (0, 0)),           # W1 (resident)
            pl.BlockSpec((H, 1), lambda i: (0, 0)),             # b1
            pl.BlockSpec((H, H), lambda i: (0, 0)),             # W2
            pl.BlockSpec((H, 1), lambda i: (0, 0)),             # b2
            pl.BlockSpec((H, 1), lambda i: (0, 0)),             # w3 column
            pl.BlockSpec(memory_space=pltpu.MemorySpace.SMEM),  # b3 scalar
        ],
        out_specs=pl.BlockSpec((1, tb), lambda i: (0, i)),
        compiler_params=pltpu.CompilerParams(**compiler_kwargs),
    )(xp, w1c, b1c, w2c, b2c, w3c, b3c)

    # (1, B_pad) -> (B, 1); pure layout, no extra compute.
    return vt[0, :B].reshape(B, 1)


def init_params(key, input_shape, hidden_dim):
    """Deterministic init with exact nn.Linear layout: W (out, in), b (out,)."""
    ks = jax.random.split(key, 6)

    def linear_init(kw, kb, fan_in, fan_out):
        bound = 1.0 / math.sqrt(fan_in)
        w = jax.random.uniform(kw, (fan_out, fan_in), jnp.float32, -bound, bound)
        b = jax.random.uniform(kb, (fan_out,), jnp.float32, -bound, bound)
        return w, b

    w1, b1 = linear_init(ks[0], ks[1], input_shape, hidden_dim)
    w2, b2 = linear_init(ks[2], ks[3], hidden_dim, hidden_dim)
    w3, b3 = linear_init(ks[4], ks[5], hidden_dim, 1)
    return (w1, b1, w2, b2, w3, b3)


def critic_net_ref(x, params, compute_dtype=jnp.float32):
    """Pure-JAX reference (optionally matching the kernel's bf16 matmul inputs)."""
    w1, b1, w2, b2, w3, b3 = params
    h = jnp.dot(x.astype(compute_dtype), w1.astype(compute_dtype).T,
                preferred_element_type=jnp.float32) + b1
    h = jax.nn.gelu(h, approximate=False)
    h = jnp.dot(h.astype(compute_dtype), w2.astype(compute_dtype).T,
                preferred_element_type=jnp.float32) + b2
    h = jax.nn.gelu(h, approximate=False)
    v = jnp.dot(h, w3.T, preferred_element_type=jnp.float32) + b3
    return v


if __name__ == "__main__":
    # Small shapes consistent with the module:
    #   input_shape = obs/state feature dim, critic_hidden_dim = hidden width,
    #   batch = flattened (bs * n_agents * t).
    batch = 8
    input_shape = 48
    hidden_dim = 32

    key = jax.random.PRNGKey(0)
    k_x, k_p = jax.random.split(key)
    x = jax.random.normal(k_x, (batch, input_shape), dtype=jnp.float32)
    params = init_params(k_p, input_shape, hidden_dim)

    v = critic_net_forward(x, params)            # bf16 matmul inputs, f32 math
    v = jax.block_until_ready(v)
    assert v.shape == (batch, 1)

    # Check against a reference with matched bf16 matmul-input casting.
    v_ref_bf16 = critic_net_ref(x, params, compute_dtype=jnp.bfloat16)
    assert jnp.allclose(v, v_ref_bf16, atol=2e-2, rtol=2e-2), \
        "mismatch vs bf16-matched pure-JAX reference"

    # Informational: distance to the full-f32 (PyTorch-equivalent) forward.
    v_ref_f32 = critic_net_ref(x, params)
    _ = float(jnp.max(jnp.abs(v - v_ref_f32)))   # expected small (bf16 matmul inputs)

    print("KERNEL_OK")
</pallas_src>

<mosaic_0001>
module attributes {stable_mosaic.version = 11 : i64} {
  func.func @critic_kernel(%arg0: i32, %arg1: memref<8x48xf32, #tpu.memory_space<vmem>>, %arg2: memref<32x48xbf16, #tpu.memory_space<vmem>>, %arg3: memref<32x1xf32, #tpu.memory_space<vmem>>, %arg4: memref<32x32xbf16, #tpu.memory_space<vmem>>, %arg5: memref<32x1xf32, #tpu.memory_space<vmem>>, %arg6: memref<32x1xf32, #tpu.memory_space<vmem>>, %arg7: memref<1x1xf32, #tpu.memory_space<smem>>, %arg8: memref<1x8xf32, #tpu.memory_space<vmem>>) attributes {dimension_semantics = [#tpu.dimension_semantics<parallel>], iteration_bounds = array<i64: 1>, scalar_prefetch = 0 : i64, scratch_operands = 0 : i64, tpu.core_type = #tpu.core_type<tc>, window_params = [{transform_indices = @transform_0, window_bounds = array<i64: 8, 48>}, {pipeline_mode = #tpu.pipeline_mode<synchronous>, transform_indices = @transform_1, window_bounds = array<i64: 32, 48>}, {pipeline_mode = #tpu.pipeline_mode<synchronous>, transform_indices = @transform_2, window_bounds = array<i64: 32, 1>}, {pipeline_mode = #tpu.pipeline_mode<synchronous>, transform_indices = @transform_3, window_bounds = array<i64: 32, 32>}, {pipeline_mode = #tpu.pipeline_mode<synchronous>, transform_indices = @transform_4, window_bounds = array<i64: 32, 1>}, {pipeline_mode = #tpu.pipeline_mode<synchronous>, transform_indices = @transform_5, window_bounds = array<i64: 32, 1>}, {transform_indices = @transform_6, window_bounds = array<i64: 1, 1>}, {transform_indices = @transform_7, window_bounds = array<i64: 1, 8>}]} {
    %c0 = arith.constant 0 : index
    %c0_0 = arith.constant 0 : index
    %0 = vector.load %arg1[%c0, %c0_0] : memref<8x48xf32, #tpu.memory_space<vmem>>, vector<8x48xf32>
    %1 = arith.truncf %0 : vector<8x48xf32> to vector<8x48xbf16>
    %c0_1 = arith.constant 0 : index
    %c0_2 = arith.constant 0 : index
    %2 = vector.load %arg2[%c0_1, %c0_2] : memref<32x48xbf16, #tpu.memory_space<vmem>>, vector<32x48xbf16>
    %cst = arith.constant dense<0.000000e+00> : vector<32x8xf32>
    %3 = tpu.matmul %2, %1, %cst {dimension_numbers = #tpu.dot_dimension_numbers<[1], [1], [0], [0], [0, 0, 1, 0], [], []>} : vector<32x48xbf16>, vector<8x48xbf16>, vector<32x8xf32> -> vector<32x8xf32>
    %c0_3 = arith.constant 0 : index
    %c0_4 = arith.constant 0 : index
    %4 = vector.load %arg3[%c0_3, %c0_4] : memref<32x1xf32, #tpu.memory_space<vmem>>, vector<32x1xf32>
    %5 = vector.broadcast %4 : vector<32x1xf32> to vector<32x8xf32>
    %6 = arith.addf %3, %5 : vector<32x8xf32>
    %cst_5 = arith.constant 5.000000e-01 : f32
    %7 = vector.broadcast %cst_5 : f32 to vector<32x8xf32>
    %8 = arith.mulf %7, %6 : vector<32x8xf32>
    %cst_6 = arith.constant 0.707106769 : f32
    %9 = vector.broadcast %cst_6 : f32 to vector<32x8xf32>
    %10 = arith.mulf %6, %9 : vector<32x8xf32>
    %11 = math.erf %10 : vector<32x8xf32>
    %cst_7 = arith.constant 1.000000e+00 : f32
    %12 = vector.broadcast %cst_7 : f32 to vector<32x8xf32>
    %13 = arith.addf %12, %11 : vector<32x8xf32>
    %14 = arith.mulf %8, %13 : vector<32x8xf32>
    %15 = arith.truncf %14 : vector<32x8xf32> to vector<32x8xbf16>
    %c0_8 = arith.constant 0 : index
    %c0_9 = arith.constant 0 : index
    %16 = vector.load %arg4[%c0_8, %c0_9] : memref<32x32xbf16, #tpu.memory_space<vmem>>, vector<32x32xbf16>
    %cst_10 = arith.constant dense<0.000000e+00> : vector<32x8xf32>
    %17 = tpu.matmul %16, %15, %cst_10 {dimension_numbers = #tpu.dot_dimension_numbers<[1], [0], [0], [1], [0, 0, 1, 1], [], []>} : vector<32x32xbf16>, vector<32x8xbf16>, vector<32x8xf32> -> vector<32x8xf32>
    %c0_11 = arith.constant 0 : index
    %c0_12 = arith.constant 0 : index
    %18 = vector.load %arg5[%c0_11, %c0_12] : memref<32x1xf32, #tpu.memory_space<vmem>>, vector<32x1xf32>
    %19 = vector.broadcast %18 : vector<32x1xf32> to vector<32x8xf32>
    %20 = arith.addf %17, %19 : vector<32x8xf32>
    %cst_13 = arith.constant 5.000000e-01 : f32
    %21 = vector.broadcast %cst_13 : f32 to vector<32x8xf32>
    %22 = arith.mulf %21, %20 : vector<32x8xf32>
    %cst_14 = arith.constant 0.707106769 : f32
    %23 = vector.broadcast %cst_14 : f32 to vector<32x8xf32>
    %24 = arith.mulf %20, %23 : vector<32x8xf32>
    %25 = math.erf %24 : vector<32x8xf32>
    %cst_15 = arith.constant 1.000000e+00 : f32
    %26 = vector.broadcast %cst_15 : f32 to vector<32x8xf32>
    %27 = arith.addf %26, %25 : vector<32x8xf32>
    %28 = arith.mulf %22, %27 : vector<32x8xf32>
    %c0_16 = arith.constant 0 : index
    %c0_17 = arith.constant 0 : index
    %29 = vector.load %arg6[%c0_16, %c0_17] : memref<32x1xf32, #tpu.memory_space<vmem>>, vector<32x1xf32>
    %30 = vector.broadcast %29 : vector<32x1xf32> to vector<32x8xf32>
    %31 = arith.mulf %28, %30 : vector<32x8xf32>
    %cst_18 = arith.constant dense<0.000000e+00> : vector<8xf32>
    %32 = vector.multi_reduction <add>, %31, %cst_18 [0] : vector<32x8xf32> to vector<8xf32>
    %33 = vector.shape_cast %32 : vector<8xf32> to vector<1x8xf32>
    %c0_19 = arith.constant 0 : index
    %c0_20 = arith.constant 0 : index
    %34 = memref.load %arg7[%c0_19, %c0_20] : memref<1x1xf32, #tpu.memory_space<smem>>
    %35 = vector.broadcast %34 : f32 to vector<1x8xf32>
    %36 = arith.addf %33, %35 : vector<1x8xf32>
    %c0_21 = arith.constant 0 : index
    %c0_22 = arith.constant 0 : index
    %37 = vector.load %arg8[%c0_21, %c0_22] : memref<1x8xf32, #tpu.memory_space<vmem>>, vector<1x8xf32>
    tpu.vector_store %arg8[%c0_21, %c0_22], %36 {strides = array<i32>} : memref<1x8xf32, #tpu.memory_space<vmem>>, vector<1x8xf32>,
    return
  }
  func.func @transform_0(%arg0: i32) -> (i32, i32) {
    %c0_i32 = arith.constant 0 : i32
    %c0_i32_0 = arith.constant 0 : i32
    return %arg0, %c0_i32 : i32, i32
  }
  func.func @transform_1(%arg0: i32) -> (i32, i32) {
    %c0_i32 = arith.constant 0 : i32
    %c0_i32_0 = arith.constant 0 : i32
    %c0_i32_1 = arith.constant 0 : i32
    return %c0_i32, %c0_i32_0 : i32, i32
  }
  func.func @transform_2(%arg0: i32) -> (i32, i32) {
    %c0_i32 = arith.constant 0 : i32
    %c0_i32_0 = arith.constant 0 : i32
    %c0_i32_1 = arith.constant 0 : i32
    return %c0_i32, %c0_i32_0 : i32, i32
  }
  func.func @transform_3(%arg0: i32) -> (i32, i32) {
    %c0_i32 = arith.constant 0 : i32
    %c0_i32_0 = arith.constant 0 : i32
    %c0_i32_1 = arith.constant 0 : i32
    return %c0_i32, %c0_i32_0 : i32, i32
  }
  func.func @transform_4(%arg0: i32) -> (i32, i32) {
    %c0_i32 = arith.constant 0 : i32
    %c0_i32_0 = arith.constant 0 : i32
    %c0_i32_1 = arith.constant 0 : i32
    return %c0_i32, %c0_i32_0 : i32, i32
  }
  func.func @transform_5(%arg0: i32) -> (i32, i32) {
    %c0_i32 = arith.constant 0 : i32
    %c0_i32_0 = arith.constant 0 : i32
    %c0_i32_1 = arith.constant 0 : i32
    return %c0_i32, %c0_i32_0 : i32, i32
  }
  func.func @transform_6(%arg0: i32) -> (i32, i32) {
    %c0_i32 = arith.constant 0 : i32
    %c0_i32_0 = arith.constant 0 : i32
    %c0_i32_1 = arith.constant 0 : i32
    return %c0_i32, %c0_i32_0 : i32, i32
  }
  func.func @transform_7(%arg0: i32) -> (i32, i32) {
    %c0_i32 = arith.constant 0 : i32
    %c0_i32_0 = arith.constant 0 : i32
    return %c0_i32, %arg0 : i32, i32
  }
}

</mosaic_0001>

<llo_original>
// kernel: tpu_custom_call.1
$region0: #{tpu_custom_call.1}
  #allocation0 [shape = 'u32[]', space=smem, size = 0x4, offset = 0x4, fixed_abs, tag = 'smem constant byte address 0x4 - core index']
  #allocation1 [shape = 'u32[144,128]{1,0:T(1,128)}', space=vmem, size = 0x12000, scoped, tag = 'internal scratch']
  #allocation2 [shape = 'f32[1,1]{1,0:T(1,128)S(6)}', space=smem, size = 0x200, scoped, tag = 'scoped memory for tpu_custom_call.1']
  %s0 = inlined_call_operand.vmem [shape: f32[8,48], index: 0, kind: input, shape index: {}]
  %s1 = inlined_call_operand.vmem [shape: bf16[32,48], index: 1, kind: input, shape index: {}]
  %s2 = inlined_call_operand.vmem [shape: f32[32,1], index: 2, kind: input, shape index: {}]
  %s3 = inlined_call_operand.vmem [shape: bf16[32,32], index: 3, kind: input, shape index: {}]
  %s4 = inlined_call_operand.vmem [shape: f32[32,1], index: 4, kind: input, shape index: {}]
  %s5 = inlined_call_operand.vmem [shape: f32[32,1], index: 5, kind: input, shape index: {}]
  %s6 = inlined_call_operand.<no memory space> [shape: f32[1,1], index: 6, kind: input, shape index: {}]
  %s7 = inlined_call_operand.hbm [shape: f32[1,8], index: 7, kind: output, shape index: {}]
  %s8 = sld [smem:[#allocation0]]
  $region38: #{tpu_custom_call.1} parent=0
    _
  %s10 = ssub.s32 1, %s8
  %s11 = scalar_select 0, %s10, %s8
  %12 = sst [smem:[#allocation2]] %s6
  $region1: #{tpu_custom_call.1} parent=0
    #allocation3 [shape = 'u8[512]{0}', space=vmem, size = 0x400, scoped, tag = 'output window, operand 0, single buffered']
    #allocation4 [shape = 's32[1]{0}', space=sflag, size = 0x4, scoped, tag = 'scoped memory for tpu_custom_call.1']
    %13 = vsyncpa [#allocation4], 0
    // Predicated region
    $region2: #{tpu_custom_call.1} parent=1 // pred_check
      _
    $region3: #{tpu_custom_call.1} parent=1 // pred_check_branch
      %15 = sbr.rel (0) target = $region5
    $region4: #{tpu_custom_call.1} parent=1 // pred_region
      _
    $region5: #{tpu_custom_call.1} parent=1 // pred_fallthru
      _
    // Predicated region
    $region6: #{tpu_custom_call.1} parent=1 // pred_check
      _
    $region7: #{tpu_custom_call.1} parent=1 // pred_check_branch
      %17 = sbr.rel (0) target = $region9
    $region8: #{tpu_custom_call.1} parent=1 // pred_region
      _
    $region9: #{tpu_custom_call.1} parent=1 // pred_fallthru
      _
    // Predicated region
    $region10: #{tpu_custom_call.1} parent=1 // pred_check
      _
    $region11: #{tpu_custom_call.1} parent=1 // pred_check_branch
      %19 = sbr.rel (0) target = $region13
    $region12: #{tpu_custom_call.1} parent=1 // pred_region
      _
    $region13: #{tpu_custom_call.1} parent=1 // pred_fallthru
      _
    // Predicated region
    $region14: #{tpu_custom_call.1} parent=1 // pred_check
      _
    $region15: #{tpu_custom_call.1} parent=1 // pred_check_branch
      %21 = sbr.rel (0) target = $region17
    $region16: #{tpu_custom_call.1} parent=1 // pred_region
      _
    $region17: #{tpu_custom_call.1} parent=1 // pred_fallthru
      _
    // Predicated region
    $region18: #{tpu_custom_call.1} parent=1 // pred_check
      _
    $region19: #{tpu_custom_call.1} parent=1 // pred_check_branch
      %23 = sbr.rel (0) target = $region21
    $region20: #{tpu_custom_call.1} parent=1 // pred_region
      _
    $region21: #{tpu_custom_call.1} parent=1 // pred_fallthru
      _
    // Predicated region
    $region22: #{tpu_custom_call.1} parent=1 // pred_check
      _
    $region23: #{tpu_custom_call.1} parent=1 // pred_check_branch
      %25 = sbr.rel (0) target = $region25
    $region24: #{tpu_custom_call.1} parent=1 // pred_region
      _
    $region25: #{tpu_custom_call.1} parent=1 // pred_fallthru
      _
    // Predicated region
    $region26: #{tpu_custom_call.1} parent=1 // pred_check
      _
    $region27: #{tpu_custom_call.1} parent=1 // pred_check_branch
      %27 = sbr.rel (0) target = $region29
    $region28: #{tpu_custom_call.1} parent=1 // pred_region
      _
    $region29: #{tpu_custom_call.1} parent=1 // pred_fallthru
      _
    %v29 = vld [vmem:[%s0] sm:$0xff]
    %v30 = vpack.c.bf16 %v29, %v29
    %v31 = vld [vmem:[%s1] sm:$0xf]
    %v32 = vld [vmem:[%s1 + $0x4] sm:$0xf]
    %v33 = vld [vmem:[%s1 + $0x8] sm:$0xf]
    %v34 = vld [vmem:[%s1 + $0xc] sm:$0xf]
    %v35 = vld [vmem:[%s2] sm:$0xff]
    %v36 = vld [vmem:[%s2 + $0x8] sm:$0xff]
    %v37 = vld [vmem:[%s2 + $0x10] sm:$0xff]
    %v38 = vld [vmem:[%s2 + $0x18] sm:$0xff]
    %40 = vset.pattern.permute.xlu0 0
    %41 = vperm.xlu0 %40, %v35
    %v42 = vpop.permute.xlu0 %41
    %45 = vset.pattern.permute.xlu0 0
    %46 = vperm.xlu0 %45, %v36
    %v47 = vpop.permute.xlu0 %46
    %50 = vset.pattern.permute.xlu0 0
    %51 = vperm.xlu0 %50, %v37
    %v52 = vpop.permute.xlu0 %51
    %55 = vset.pattern.permute.xlu0 0
    %56 = vperm.xlu0 %55, %v38
    %v57 = vpop.permute.xlu0 %56
    %v63 = vunpack.c.l.b16 %v31
    %v64 = vunpack.c.l.b16 %v32
    %v65 = vunpack.c.l.b16 %v33
    %v66 = vunpack.c.l.b16 %v34
    %v67 = vpack.c.b16 %v64, %v63
    %v68 = vpack.c.b16 %v66, %v65
    %vm69 = vcmask 392192
    %v71 = vsel %vm69, %v67, 0
    %v74 = vsel %vm69, %v68, 0
    %v77 = vsel %vm69, %v30, 0
    %79 = vmatprep.subr.bf16.mxu0 0
    %80 = vmatpush1.bf16.xpose.msra.mxu0 %v77
    %81 = vmatprep.subr.bf16.mxu0 0
    %82 = vmatpush1.bf16.xpose.msra.mxu0 0
    %83 = vmatprep.subr.bf16.mxu0 0
    %84 = vmatpush1.bf16.xpose.msra.mxu0 0
    %85 = vmatprep.subr.bf16.mxu0 0
    %86 = vmatpush1.bf16.xpose.msra.mxu0 0
    %87 = vmatprep.subr.bf16.mxu0 0
    %88 = vmatpush1.bf16.xpose.msra.mxu0 0
    %89 = vmatprep.subr.bf16.mxu0 0
    %90 = vmatpush1.bf16.xpose.msra.mxu0 0
    %91 = vmatprep.subr.bf16.mxu0 0
    %92 = vmatpush1.bf16.xpose.msra.mxu0 0
    %93 = vmatprep.subr.bf16.mxu0 0
    %94 = vmatpush1.bf16.xpose.msra.mxu0 0
    %95 = vmatprep.subr.bf16.mxu0 0
    %96 = vmatpush1.bf16.xpose.msra.mxu0 0
    %97 = vmatprep.subr.bf16.mxu0 0
    %98 = vmatpush1.bf16.xpose.msra.mxu0 0
    %99 = vmatprep.subr.bf16.mxu0 0
    %100 = vmatpush1.bf16.xpose.msra.mxu0 0
    %101 = vmatprep.subr.bf16.mxu0 0
    %102 = vmatpush1.bf16.xpose.msra.mxu0 0
    %103 = vmatprep.subr.bf16.mxu0 0
    %104 = vmatpush1.bf16.xpose.msra.mxu0 0
    %105 = vmatprep.subr.bf16.mxu0 0
    %106 = vmatpush1.bf16.xpose.msra.mxu0 0
    %107 = vmatprep.subr.bf16.mxu0 0
    %108 = vmatpush1.bf16.xpose.msra.mxu0 0
    %109 = vmatprep.subr.bf16.mxu0 0
    %110 = vmatpush1.bf16.xpose.msra.mxu0 0
    %111 = vmatprep.mubr.bf16.mxu0 0
    %112 = vmatmul.mubr.bf16.gmra.mrb[0].mxu0 %v71
    %v113 = vpop.f32.mrb[0].mxu0
    %v114 = vadd.f32 %v42, %v113
    %v115 = vpop.f32.mrb[0].mxu0
    %v116 = vpop.f32.mrb[0].mxu0
    %v117 = vadd.f32 %v47, %v116
    %v118 = vpop.f32.mrb[0].mxu0
    %119 = vmatprep.mubr.bf16.mxu0 0
    %120 = vmatmul.mubr.bf16.gmra.mrb[0].mxu0 %v74
    %v121 = vpop.f32.mrb[0].mxu0
    %v122 = vadd.f32 %v52, %v121
    %v123 = vpop.f32.mrb[0].mxu0
    %v124 = vpop.f32.mrb[0].mxu0
    %v125 = vadd.f32 %v57, %v124
    %v126 = vpop.f32.mrb[0].mxu0
    %127 = vdwg.mxu0
    %v128 = vmul.f32 %v114, 0.5
    %v129 = vmul.f32 %v117, 0.5
    %v130 = vmul.f32 %v122, 0.5
    %v131 = vmul.f32 %v125, 0.5
    %v132 = vmul.f32 %v114, 0.70710677
    %v133 = vmul.f32 %v117, 0.70710677
    %v134 = vmul.f32 %v122, 0.70710677
    %v135 = vmul.f32 %v125, 0.70710677
    %v136 = verf.f32.pop %v132
    %v137 = verf.f32.pop %v133
    %v138 = verf.f32.pop %v134
    %v139 = verf.f32.pop %v135
    %v140 = vadd.f32 %v136, 1.0
    %v141 = vadd.f32 %v137, 1.0
    %v142 = vadd.f32 %v138, 1.0
    %v143 = vadd.f32 %v139, 1.0
    %v144 = vmul.f32 %v128, %v140
    %v145 = vmul.f32 %v129, %v141
    %v146 = vmul.f32 %v130, %v142
    %v147 = vmul.f32 %v131, %v143
    %v148 = vpack.c.bf16 %v145, %v144
    %v149 = vpack.c.bf16 %v147, %v146
    %v150 = vld [vmem:[%s3] sm:$0xf]
    %v151 = vld [vmem:[%s3 + $0x4] sm:$0xf]
    %v152 = vld [vmem:[%s3 + $0x8] sm:$0xf]
    %v153 = vld [vmem:[%s3 + $0xc] sm:$0xf]
    %v154 = vld [vmem:[%s4] sm:$0xff]
    %v155 = vld [vmem:[%s4 + $0x8] sm:$0xff]
    %v156 = vld [vmem:[%s4 + $0x10] sm:$0xff]
    %v157 = vld [vmem:[%s4 + $0x18] sm:$0xff]
    %159 = vset.pattern.permute.xlu0 0
    %160 = vperm.xlu0 %159, %v154
    %v161 = vpop.permute.xlu0 %160
    %164 = vset.pattern.permute.xlu0 0
    %165 = vperm.xlu0 %164, %v155
    %v166 = vpop.permute.xlu0 %165
    %169 = vset.pattern.permute.xlu0 0
    %170 = vperm.xlu0 %169, %v156
    %v171 = vpop.permute.xlu0 %170
    %174 = vset.pattern.permute.xlu0 0
    %175 = vperm.xlu0 %174, %v157
    %v176 = vpop.permute.xlu0 %175
    %v182 = vunpack.c.l.b16 %v150
    %v183 = vunpack.c.l.b16 %v151
    %v184 = vunpack.c.l.b16 %v152
    %v185 = vunpack.c.l.b16 %v153
    %v186 = vpack.c.b16 %v183, %v182
    %v187 = vpack.c.b16 %v185, %v184
    %vm188 = vcmask 261120
    %v190 = vsel %vm188, %v186, 0
    %v193 = vsel %vm188, %v187, 0
    %195 = vmatprep.subr.bf16.mxu0 0
    %196 = vmatpush1.bf16.msra.mxu0 %v148
    %197 = vmatprep.subr.bf16.mxu0 0
    %198 = vmatpush1.bf16.msra.mxu0 %v149
    %199 = vmatprep.subr.bf16.mxu0 0
    %200 = vmatpush1.bf16.msra.mxu0 0
    %201 = vmatprep.subr.bf16.mxu0 0
    %202 = vmatpush1.bf16.msra.mxu0 0
    %203 = vmatprep.subr.bf16.mxu0 0
    %204 = vmatpush1.bf16.msra.mxu0 0
    %205 = vmatprep.subr.bf16.mxu0 0
    %206 = vmatpush1.bf16.msra.mxu0 0
    %207 = vmatprep.subr.bf16.mxu0 0
    %208 = vmatpush1.bf16.msra.mxu0 0
    %209 = vmatprep.subr.bf16.mxu0 0
    %210 = vmatpush1.bf16.msra.mxu0 0
    %211 = vmatprep.subr.bf16.mxu0 0
    %212 = vmatpush1.bf16.msra.mxu0 0
    %213 = vmatprep.subr.bf16.mxu0 0
    %214 = vmatpush1.bf16.msra.mxu0 0
    %215 = vmatprep.subr.bf16.mxu0 0
    %216 = vmatpush1.bf16.msra.mxu0 0
    %217 = vmatprep.subr.bf16.mxu0 0
    %218 = vmatpush1.bf16.msra.mxu0 0
    %219 = vmatprep.subr.bf16.mxu0 0
    %220 = vmatpush1.bf16.msra.mxu0 0
    %221 = vmatprep.subr.bf16.mxu0 0
    %222 = vmatpush1.bf16.msra.mxu0 0
    %223 = vmatprep.subr.bf16.mxu0 0
    %224 = vmatpush1.bf16.msra.mxu0 0
    %225 = vmatprep.subr.bf16.mxu0 0
    %226 = vmatpush1.bf16.msra.mxu0 0
    %227 = vmatprep.mubr.bf16.mxu0 0
    %228 = vmatmul.mubr.bf16.gmra.mrb[0].mxu0 %v190
    %v229 = vpop.f32.mrb[0].mxu0
    %v230 = vadd.f32 %v161, %v229
    %v231 = vpop.f32.mrb[0].mxu0
    %v232 = vpop.f32.mrb[0].mxu0
    %v233 = vadd.f32 %v166, %v232
    %v234 = vpop.f32.mrb[0].mxu0
    %235 = vmatprep.mubr.bf16.mxu0 0
    %236 = vmatmul.mubr.bf16.gmra.mrb[0].mxu0 %v193
    %v237 = vpop.f32.mrb[0].mxu0
    %v238 = vadd.f32 %v171, %v237
    %v239 = vpop.f32.mrb[0].mxu0
    %v240 = vpop.f32.mrb[0].mxu0
    %v241 = vadd.f32 %v176, %v240
    %v242 = vpop.f32.mrb[0].mxu0
    %243 = vdwg.mxu0
    %v244 = vmul.f32 %v230, 0.5
    %v245 = vmul.f32 %v233, 0.5
    %v246 = vmul.f32 %v238, 0.5
    %v247 = vmul.f32 %v241, 0.5
    %v248 = vmul.f32 %v230, 0.70710677
    %v249 = vmul.f32 %v233, 0.70710677
    %v250 = vmul.f32 %v238, 0.70710677
    %v251 = vmul.f32 %v241, 0.70710677
    %v252 = verf.f32.pop %v248
    %v253 = verf.f32.pop %v249
    %v254 = verf.f32.pop %v250
    %v255 = verf.f32.pop %v251
    %v256 = vadd.f32 %v252, 1.0
    %v257 = vadd.f32 %v253, 1.0
    %v258 = vadd.f32 %v254, 1.0
    %v259 = vadd.f32 %v255, 1.0
    %v260 = vmul.f32 %v244, %v256
    %v261 = vmul.f32 %v245, %v257
    %v262 = vmul.f32 %v246, %v258
    %v263 = vmul.f32 %v247, %v259
    %v264 = vld [vmem:[%s5] sm:$0xff]
    %v265 = vld [vmem:[%s5 + $0x8] sm:$0xff]
    %v266 = vld [vmem:[%s5 + $0x10] sm:$0xff]
    %v267 = vld [vmem:[%s5 + $0x18] sm:$0xff]
    %269 = vset.pattern.permute.xlu0 0
    %270 = vperm.xlu0 %269, %v264
    %v271 = vpop.permute.xlu0 %270
    %274 = vset.pattern.permute.xlu0 0
    %275 = vperm.xlu0 %274, %v265
    %v276 = vpop.permute.xlu0 %275
    %279 = vset.pattern.permute.xlu0 0
    %280 = vperm.xlu0 %279, %v266
    %v281 = vpop.permute.xlu0 %280
    %284 = vset.pattern.permute.xlu0 0
    %285 = vperm.xlu0 %284, %v267
    %v286 = vpop.permute.xlu0 %285
    %v288 = vmul.f32 %v260, %v271
    %v289 = vmul.f32 %v261, %v276
    %v290 = vmul.f32 %v262, %v281
    %v291 = vmul.f32 %v263, %v286
    %vm292 = vcmask 64512
    %v293 = vsel %vm292, %v288, 0.0
    %v294 = vsel %vm292, %v289, 0.0
    %v295 = vadd.f32 %v293, %v294
    %v296 = vsel %vm292, %v290, 0.0
    %v297 = vadd.f32 %v295, %v296
    %v298 = vsel %vm292, %v291, 0.0
    %v299 = vadd.f32 %v297, %v298
    %v300 = vrot.slane %v299, 4
    %v301 = vadd.f32 %v299, %v300
    %v302 = vrot.slane %v301, 2
    %v303 = vadd.f32 %v301, %v302
    %v304 = vrot.slane %v303, 1
    %v305 = vadd.f32 %v303, %v304
    %s306 = sld [smem:[#allocation2]]
    %v307 = vstv %s306
    %v308 = vadd.f32 %v305, %v307
    %vm309 = vcmask 57344
    %310 = vst.msk [vmem:[#allocation3] sm:$0x1] %vm309, %v308
    // Predicated region
    $region30: #{tpu_custom_call.1} parent=1 // pred_check
      _
    $region31: #{tpu_custom_call.1} parent=1 // pred_check_branch
      %312 = sbr.rel (0) target = $region33
    $region32: #{tpu_custom_call.1} parent=1 // pred_region
      %s314 = ssub.s32 16, 16
      %315 = vsyncadd [#allocation4], %s314
      %s317 = sshll.u32 [#allocation3], 4
      %s318 = int_to_ptr.vmem [resolvable:$true] %s317
      %320 = dma.vmem_to_hbm [thread:$0]  %s318, 16, %s7, [#allocation4]
    $region33: #{tpu_custom_call.1} parent=1 // pred_fallthru
      _
    // Predicated region
    $region34: #{tpu_custom_call.1} parent=1 // pred_check
      _
    $region35: #{tpu_custom_call.1} parent=1 // pred_check_branch
      %322 = sbr.rel (0) target = $region37
    $region36: #{tpu_custom_call.1} parent=1 // pred_region
      %323 = dma.done [#allocation4], 16
    $region37: #{tpu_custom_call.1} parent=1 // pred_fallthru
      _
    %324 = vsyncpa [#allocation4], 1

</llo_original>
